<compile_context>
chip_gen: v5e
topology: v5e:2x2
jax: 0.10.0
libtpu: 0.0.40
codegen_flags: <defaults>
</compile_context>

<pallas_src>
import jax
import jax.numpy as jnp
from jax.experimental import pallas as pl
from jax.experimental.pallas import tpu as pltpu


def fused_state_emb_concat_kernel(pe_ref, x_ref, w_ref, b_ref, o_ref):
    """Single program writes the whole fused output slab.

    pe_ref: (B, P*N)      perceptual tokens, flattened lane-dense
    x_ref:  (B, T*K)      robot states, flattened per batch row
    w_ref:  (T*K, T*N)    block-diagonal replicated, pre-transposed Linear weight
    b_ref:  (1, T*N)      bias tiled T times
    o_ref:  (B, (P+T)*N)  fused output slab (flattened sequence x latent)
    """
    pn = pe_ref.shape[1]  # P * N, static Python int

    # 1) Perceptual tokens: straight lane-dense copy into out[:, :P*N]
    #    (this is the fused torch.cat -- no separate HBM concat pass).
    o_ref[:, :pn] = pe_ref[...]

    # 2) Robot-state embedding: one MXU pass with f32 accumulation.  The
    #    block-diagonal RHS means the result is already in the flattened
    #    (B, T*N) layout of the slab tail: y = x_flat @ blockdiag(W^T) + bias.
    y = jnp.dot(x_ref[...], w_ref[...], preferred_element_type=jnp.float32)
    o_ref[:, pn:] = (y + b_ref[...]).astype(o_ref.dtype)


def compute_input_embeddings(perceptual_emb, robot_states, weight, bias):
    """Mirrors the BaseAgent branch:
         robot_states   = self.state_emb(robot_states)          # nn.Linear
         perceptual_emb = torch.cat([perceptual_emb, robot_states], dim=1)

    perceptual_emb: (B, P, latent_dim) float32
    robot_states:   (B, T, state_dim)  float32
    weight:         (latent_dim, state_dim)   -- PyTorch nn.Linear layout
    bias:           (latent_dim,)
    returns:        (B, P+T, latent_dim) float32
    """
    B, T, K = robot_states.shape
    N = weight.shape[0]
    Bp, P, Np = perceptual_emb.shape
    assert Bp == B and Np == N, "perceptual_emb must share batch / latent dims"

    # --- parameter prep (one-time per weight in a real deployment) ---
    # Pre-transpose (N,K) -> (K,N) so the MXU RHS needs no in-kernel transpose,
    # then replicate on a block diagonal so a single 2-D matmul embeds all T
    # timesteps directly into the flattened (B, T*N) output layout.
    w_t = weight.T                                            # (K, N)
    w_bd = jnp.kron(jnp.eye(T, dtype=weight.dtype), w_t)      # (T*K, T*N)
    b_flat = jnp.tile(bias, T).reshape(1, T * N)              # (1, T*N)

    # --- free wrapper-side layout plumbing (plain XLA reshapes) ---
    pe_flat = perceptual_emb.reshape(B, P * N)                # (B, P*N)
    x_flat = robot_states.reshape(B, T * K)                   # (B, T*K)

    out_flat = pl.pallas_call(
        fused_state_emb_concat_kernel,
        out_shape=jax.ShapeDtypeStruct((B, (P + T) * N), jnp.float32),
        grid_spec=pl.GridSpec(
            grid=(1,),
            in_specs=[
                pl.BlockSpec((B, P * N), lambda i: (0, 0)),
                pl.BlockSpec((B, T * K), lambda i: (0, 0)),
                pl.BlockSpec((T * K, T * N), lambda i: (0, 0)),
                pl.BlockSpec((1, T * N), lambda i: (0, 0)),
            ],
            out_specs=pl.BlockSpec((B, (P + T) * N), lambda i: (0, 0)),
        ),
        compiler_params=pltpu.CompilerParams(
            dimension_semantics=("arbitrary",),
        ),
    )(pe_flat, x_flat, w_bd, b_flat)

    # Undo the lane-dense packing (free reshape).
    return out_flat.reshape(B, P + T, N)


if __name__ == "__main__":
    # Small shapes consistent with the module's __init__ signature.
    B = 2            # batch
    obs_seq_len = 4  # T for robot_states
    P = 8            # perceptual token sequence length
    state_dim = 16
    latent_dim = 32

    key = jax.random.PRNGKey(0)
    k_w, k_b, k_rs, k_pe = jax.random.split(key, 4)

    # Deterministic parameter init (nn.Linear(state_dim, latent_dim) shapes).
    bound = 1.0 / (state_dim ** 0.5)
    weight = jax.random.uniform(
        k_w, (latent_dim, state_dim), jnp.float32, -bound, bound)
    bias = jax.random.uniform(
        k_b, (latent_dim,), jnp.float32, -bound, bound)

    # Inputs.
    robot_states = jax.random.normal(
        k_rs, (B, obs_seq_len, state_dim), jnp.float32)
    perceptual_emb = jax.random.normal(
        k_pe, (B, P, latent_dim), jnp.float32)

    out = compute_input_embeddings(perceptual_emb, robot_states, weight, bias)
    out = jax.block_until_ready(out)

    # Sanity check against plain-JAX reference of the nn.Linear + cat path.
    robot_emb_ref = (jnp.einsum("btk,nk->btn", robot_states, weight) + bias)
    ref = jnp.concatenate([perceptual_emb, robot_emb_ref], axis=1)
    assert out.shape == (B, P + obs_seq_len, latent_dim)
    assert jnp.allclose(out, ref, atol=1e-5), "mismatch vs reference"

    print("KERNEL_OK")
</pallas_src>

<mosaic_0001>
module attributes {stable_mosaic.version = 11 : i64} {
  func.func @fused_state_emb_concat_kernel(%arg0: i32, %arg1: memref<2x256xf32, #tpu.memory_space<vmem>>, %arg2: memref<2x64xf32, #tpu.memory_space<vmem>>, %arg3: memref<64x128xf32, #tpu.memory_space<vmem>>, %arg4: memref<1x128xf32, #tpu.memory_space<vmem>>, %arg5: memref<2x384xf32, #tpu.memory_space<vmem>>) attributes {dimension_semantics = [#tpu.dimension_semantics<arbitrary>], iteration_bounds = array<i64: 1>, scalar_prefetch = 0 : i64, scratch_operands = 0 : i64, tpu.core_type = #tpu.core_type<tc>, window_params = [{pipeline_mode = #tpu.pipeline_mode<synchronous>, transform_indices = @transform_0, window_bounds = array<i64: 2, 256>}, {pipeline_mode = #tpu.pipeline_mode<synchronous>, transform_indices = @transform_1, window_bounds = array<i64: 2, 64>}, {pipeline_mode = #tpu.pipeline_mode<synchronous>, transform_indices = @transform_2, window_bounds = array<i64: 64, 128>}, {pipeline_mode = #tpu.pipeline_mode<synchronous>, transform_indices = @transform_3, window_bounds = array<i64: 1, 128>}, {pipeline_mode = #tpu.pipeline_mode<synchronous>, transform_indices = @transform_4, window_bounds = array<i64: 2, 384>}]} {
    %c0 = arith.constant 0 : index
    %c0_0 = arith.constant 0 : index
    %0 = vector.load %arg1[%c0, %c0_0] : memref<2x256xf32, #tpu.memory_space<vmem>>, vector<2x256xf32>
    %c0_1 = arith.constant 0 : index
    %c0_2 = arith.constant 0 : index
    %1 = vector.load %arg5[%c0_1, %c0_2] : memref<2x384xf32, #tpu.memory_space<vmem>>, vector<2x256xf32>
    tpu.vector_store %arg5[%c0_1, %c0_2], %0 {strides = array<i32>} : memref<2x384xf32, #tpu.memory_space<vmem>>, vector<2x256xf32>,
    %c0_3 = arith.constant 0 : index
    %c0_4 = arith.constant 0 : index
    %2 = vector.load %arg2[%c0_3, %c0_4] : memref<2x64xf32, #tpu.memory_space<vmem>>, vector<2x64xf32>
    %c0_5 = arith.constant 0 : index
    %c0_6 = arith.constant 0 : index
    %3 = vector.load %arg3[%c0_5, %c0_6] : memref<64x128xf32, #tpu.memory_space<vmem>>, vector<64x128xf32>
    %cst = arith.constant dense<0.000000e+00> : vector<2x128xf32>
    %4 = tpu.matmul %2, %3, %cst {dimension_numbers = #tpu.dot_dimension_numbers<[1], [0], [0], [1], [0, 0, 1, 1], [], []>} : vector<2x64xf32>, vector<64x128xf32>, vector<2x128xf32> -> vector<2x128xf32>
    %c0_7 = arith.constant 0 : index
    %c0_8 = arith.constant 0 : index
    %5 = vector.load %arg4[%c0_7, %c0_8] : memref<1x128xf32, #tpu.memory_space<vmem>>, vector<1x128xf32>
    %6 = vector.broadcast %5 : vector<1x128xf32> to vector<2x128xf32>
    %7 = arith.addf %4, %6 : vector<2x128xf32>
    %c0_9 = arith.constant 0 : index
    %c256 = arith.constant 256 : index
    %8 = vector.load %arg5[%c0_9, %c256] : memref<2x384xf32, #tpu.memory_space<vmem>>, vector<2x128xf32>
    tpu.vector_store %arg5[%c0_9, %c256], %7 {strides = array<i32>} : memref<2x384xf32, #tpu.memory_space<vmem>>, vector<2x128xf32>,
    return
  }
  func.func @transform_0(%arg0: i32) -> (i32, i32) {
    %c0_i32 = arith.constant 0 : i32
    %c0_i32_0 = arith.constant 0 : i32
    %c0_i32_1 = arith.constant 0 : i32
    return %c0_i32, %c0_i32_0 : i32, i32
  }
  func.func @transform_1(%arg0: i32) -> (i32, i32) {
    %c0_i32 = arith.constant 0 : i32
    %c0_i32_0 = arith.constant 0 : i32
    %c0_i32_1 = arith.constant 0 : i32
    return %c0_i32, %c0_i32_0 : i32, i32
  }
  func.func @transform_2(%arg0: i32) -> (i32, i32) {
    %c0_i32 = arith.constant 0 : i32
    %c0_i32_0 = arith.constant 0 : i32
    %c0_i32_1 = arith.constant 0 : i32
    return %c0_i32, %c0_i32_0 : i32, i32
  }
  func.func @transform_3(%arg0: i32) -> (i32, i32) {
    %c0_i32 = arith.constant 0 : i32
    %c0_i32_0 = arith.constant 0 : i32
    %c0_i32_1 = arith.constant 0 : i32
    return %c0_i32, %c0_i32_0 : i32, i32
  }
  func.func @transform_4(%arg0: i32) -> (i32, i32) {
    %c0_i32 = arith.constant 0 : i32
    %c0_i32_0 = arith.constant 0 : i32
    %c0_i32_1 = arith.constant 0 : i32
    return %c0_i32, %c0_i32_0 : i32, i32
  }
}

</mosaic_0001>

<llo_original>
// kernel: tpu_custom_call.1
$region0: #{tpu_custom_call.1}
  #allocation0 [shape = 'u32[]', space=smem, size = 0x4, offset = 0x4, fixed_abs, tag = 'smem constant byte address 0x4 - core index']
  #allocation1 [shape = 'u32[72,128]{1,0:T(1,128)}', space=vmem, size = 0x9000, scoped, tag = 'internal scratch']
  %s0 = inlined_call_operand.hbm [shape: f32[2,256], index: 0, kind: input, shape index: {}]
  %s1 = inlined_call_operand.hbm [shape: f32[2,64], index: 1, kind: input, shape index: {}]
  %s2 = inlined_call_operand.hbm [shape: f32[64,128], index: 2, kind: input, shape index: {}]
  %s3 = inlined_call_operand.vmem [shape: f32[1,128], index: 3, kind: input, shape index: {}]
  %s4 = inlined_call_operand.hbm [shape: f32[2,384], index: 4, kind: output, shape index: {}]
  %s5 = sld [smem:[#allocation0]]
  $region38: #{tpu_custom_call.1} parent=0
    _
  %s7 = ssub.s32 1, %s5
  %s8 = scalar_select 0, %s7, %s5
  $region1: #{tpu_custom_call.1} parent=0
    #allocation2 [shape = 'u8[2048]{0}', space=vmem, size = 0x800, scoped, tag = 'input window, operand 0, single buffered']
    #allocation3 [shape = 's32[1]{0}', space=sflag, size = 0x4, scoped, tag = 'scoped memory for tpu_custom_call.1']
    #allocation4 [shape = 's32[1]{0}', space=sflag, size = 0x4, scoped, tag = 'scoped memory for tpu_custom_call.1']
    #allocation5 [shape = 'u8[1024]{0}', space=vmem, size = 0x400, scoped, tag = 'input window, operand 1, single buffered']
    #allocation6 [shape = 's32[1]{0}', space=sflag, size = 0x4, scoped, tag = 'scoped memory for tpu_custom_call.1']
    #allocation7 [shape = 'u8[32768]{0}', space=vmem, size = 0x8000, scoped, tag = 'input window, operand 2, single buffered']
    #allocation8 [shape = 'u8[3072]{0}', space=vmem, size = 0xc00, scoped, tag = 'output window, operand 0, single buffered']
    %9 = vsyncpa [#allocation3], 0
    %10 = vsyncpa [#allocation6], 0
    %11 = vsyncpa [#allocation4], 0
    // Predicated region
    $region2: #{tpu_custom_call.1} parent=1 // pred_check
      _
    $region3: #{tpu_custom_call.1} parent=1 // pred_check_branch
      %13 = sbr.rel (0) target = $region5
    $region4: #{tpu_custom_call.1} parent=1 // pred_region
      %15 = vsyncadd [#allocation3], 0
      %s17 = sshll.u32 %s0, 4
      %s18 = int_to_ptr.hbm [resolvable:$true] %s17
      %s19 = sshll.u32 [#allocation2], 4
      %s20 = int_to_ptr.vmem [resolvable:$true] %s19
      %22 = dma.hbm_to_vmem [thread:$0]  %s18, 64, %s20, [#allocation3]
    $region5: #{tpu_custom_call.1} parent=1 // pred_fallthru
      _
    // Predicated region
    $region6: #{tpu_custom_call.1} parent=1 // pred_check
      _
    $region7: #{tpu_custom_call.1} parent=1 // pred_check_branch
      %24 = sbr.rel (0) target = $region9
    $region8: #{tpu_custom_call.1} parent=1 // pred_region
      %26 = vsyncadd [#allocation6], 0
      %s28 = sshll.u32 %s1, 4
      %s29 = int_to_ptr.hbm [resolvable:$true] %s28
      %s30 = sshll.u32 [#allocation5], 4
      %s31 = int_to_ptr.vmem [resolvable:$true] %s30
      %33 = dma.hbm_to_vmem [thread:$0]  %s29, 32, %s31, [#allocation6]
    $region9: #{tpu_custom_call.1} parent=1 // pred_fallthru
      _
    // Predicated region
    $region10: #{tpu_custom_call.1} parent=1 // pred_check
      _
    $region11: #{tpu_custom_call.1} parent=1 // pred_check_branch
      %35 = sbr.rel (0) target = $region13
    $region12: #{tpu_custom_call.1} parent=1 // pred_region
      %37 = vsyncadd [#allocation6], 0
      %s38 = sshll.u32 %s2, 4
      %s39 = int_to_ptr.hbm [resolvable:$true] %s38
      %s40 = sshll.u32 [#allocation7], 4
      %s41 = int_to_ptr.vmem [resolvable:$true] %s40
      %46 = dma.hbm_to_vmem [thread:$0]  %s39, 1024, %s41, [#allocation6], 128, 128, 8
    $region13: #{tpu_custom_call.1} parent=1 // pred_fallthru
      _
    // Predicated region
    $region14: #{tpu_custom_call.1} parent=1 // pred_check
      _
    $region15: #{tpu_custom_call.1} parent=1 // pred_check_branch
      %48 = sbr.rel (0) target = $region17
    $region16: #{tpu_custom_call.1} parent=1 // pred_region
      _
    $region17: #{tpu_custom_call.1} parent=1 // pred_fallthru
      _
    // Predicated region
    $region18: #{tpu_custom_call.1} parent=1 // pred_check
      _
    $region19: #{tpu_custom_call.1} parent=1 // pred_check_branch
      %50 = sbr.rel (0) target = $region21
    $region20: #{tpu_custom_call.1} parent=1 // pred_region
      %52 = dma.done [#allocation3], 64
    $region21: #{tpu_custom_call.1} parent=1 // pred_fallthru
      _
    // Predicated region
    $region22: #{tpu_custom_call.1} parent=1 // pred_check
      _
    $region23: #{tpu_custom_call.1} parent=1 // pred_check_branch
      %54 = sbr.rel (0) target = $region25
    $region24: #{tpu_custom_call.1} parent=1 // pred_region
      %56 = dma.done [#allocation6], 32
    $region25: #{tpu_custom_call.1} parent=1 // pred_fallthru
      _
    // Predicated region
    $region26: #{tpu_custom_call.1} parent=1 // pred_check
      _
    $region27: #{tpu_custom_call.1} parent=1 // pred_check_branch
      %58 = sbr.rel (0) target = $region29
    $region28: #{tpu_custom_call.1} parent=1 // pred_region
      %60 = dma.done [#allocation6], 1024
    $region29: #{tpu_custom_call.1} parent=1 // pred_fallthru
      _
    %v61 = vld [vmem:[#allocation2] sm:$0xf]
    %62 = vst [vmem:[#allocation8] sm:$0xf] %v61
    %v63 = vld [vmem:[#allocation5] sm:$0x3]
    %v64 = vld [vmem:[#allocation7] sm:$0xff]
    %v65 = vld [vmem:[#allocation7 + $0x8] sm:$0xff]
    %v66 = vld [vmem:[#allocation7 + $0x10] sm:$0xff]
    %v67 = vld [vmem:[#allocation7 + $0x18] sm:$0xff]
    %v68 = vld [vmem:[#allocation7 + $0x20] sm:$0xff]
    %v69 = vld [vmem:[#allocation7 + $0x28] sm:$0xff]
    %v70 = vld [vmem:[#allocation7 + $0x30] sm:$0xff]
    %v71 = vld [vmem:[#allocation7 + $0x38] sm:$0xff]
    %v72 = vld [vmem:[%s3] sm:$0x1]
    %v74 = vperm.slane %v72, 0
    %vm76 = vcmask 523264
    %v78 = vsel %vm76, %v63, 0
    %80 = vmatpush.msra.mxu0 0.0
    %81 = vmatpush.msra.mxu0 0.0
    %82 = vmatpush.msra.mxu0 0.0
    %83 = vmatpush.msra.mxu0 0.0
    %84 = vmatpush.msra.mxu0 0.0
    %85 = vmatpush.msra.mxu0 0.0
    %86 = vmatpush.msra.mxu0 0.0
    %87 = vmatpush.msra.mxu0 0.0
    %88 = vmatpush.msra.mxu0 %v71
    %89 = vmatpush.msra.mxu0 %v70
    %90 = vmatpush.msra.mxu0 %v69
    %91 = vmatpush.msra.mxu0 %v68
    %92 = vmatpush.msra.mxu0 %v67
    %93 = vmatpush.msra.mxu0 %v66
    %94 = vmatpush.msra.mxu0 %v65
    %95 = vmatpush.msra.mxu0 %v64
    %96 = vmatmul.f32.gmra.mxu0 %v78
    %v97 = vpop.f32.mrf.mxu0
    %v98 = vadd.f32 %v74, %v97
    %99 = vdwg.mxu0
    %100 = vst [vmem:[#allocation8 + $0x4] sm:$0x3] %v98
    // Predicated region
    $region30: #{tpu_custom_call.1} parent=1 // pred_check
      _
    $region31: #{tpu_custom_call.1} parent=1 // pred_check_branch
      %102 = sbr.rel (0) target = $region33
    $region32: #{tpu_custom_call.1} parent=1 // pred_region
      %104 = vsyncadd [#allocation4], 0
      %s106 = sshll.u32 [#allocation8], 4
      %s107 = int_to_ptr.vmem [resolvable:$true] %s106
      %s108 = sshll.u32 %s4, 4
      %s109 = int_to_ptr.hbm [resolvable:$true] %s108
      %111 = dma.vmem_to_hbm [thread:$0]  %s107, 96, %s109, [#allocation4]
    $region33: #{tpu_custom_call.1} parent=1 // pred_fallthru
      _
    // Predicated region
    $region34: #{tpu_custom_call.1} parent=1 // pred_check
      _
    $region35: #{tpu_custom_call.1} parent=1 // pred_check_branch
      %113 = sbr.rel (0) target = $region37
    $region36: #{tpu_custom_call.1} parent=1 // pred_region
      %115 = dma.done [#allocation4], 96
    $region37: #{tpu_custom_call.1} parent=1 // pred_fallthru
      _
    %116 = vsyncpa [#allocation3], 1
    %117 = vsyncpa [#allocation6], 1
    %118 = vsyncpa [#allocation4], 1

</llo_original>
